<compile_context>
chip_gen: v7x
topology: tpu7x:2x2x1
jax: 0.10.0
libtpu: 0.0.40
codegen_flags: <defaults>
</compile_context>

<pallas_src>
import jax
import jax.numpy as jnp
from jax.experimental import pallas as pl
from jax.experimental.pallas import tpu as pltpu

IN_FEATURES = 28 * 28        # 784
IN_PAD = 896                 # 7 * 128, lane-aligned feature dim
HIDDEN = 128
NUM_CLASSES = 10
CLASS_PAD = 128              # lane-aligned class dim
DEFAULT_TILE_B = 512         # batch rows per grid step (multiple of 8)
NEG_BIG = -1.0e30            # bias for padded logit columns (exp -> 0)


def simplenn_kernel(x_ref, w1_ref, b1_ref, w2_ref, b2_ref, o_ref):
    # x_ref:  (TILE_B, 896) bf16    w1_ref: (896, 128) bf16   b1_ref: (1, 128) f32
    # w2_ref: (128, 128)  bf16      b2_ref: (1, 128)  f32     o_ref:  (TILE_B, 128) f32
    # fc1 + relu  (bf16 MXU matmul, f32 accumulate; bias/elementwise in f32)
    h = jnp.dot(x_ref[...], w1_ref[...],
                preferred_element_type=jnp.float32) + b1_ref[...]
    h = jnp.maximum(h, 0.0)

    # TODO(synk): nn.Dropout(0.2) is an inference-time identity; training-mode
    # stochastic masking (pltpu.prng_*) is intentionally not applied here.

    # fc2 (cast activations to bf16 for the MXU, accumulate in f32)
    z = jnp.dot(h.astype(jnp.bfloat16), w2_ref[...],
                preferred_element_type=jnp.float32) + b2_ref[...]

    # log_softmax over classes. Padded columns carry a -1e30 bias, so their
    # exp underflows to 0 and the normalization matches the 10-class softmax.
    m = jnp.max(z, axis=-1, keepdims=True)
    zs = z - m
    lse = jnp.log(jnp.sum(jnp.exp(zs), axis=-1, keepdims=True))
    o_ref[...] = (zs - lse).astype(o_ref.dtype)


def _round_up(n, m):
    return ((n + m - 1) // m) * m


def _pick_tile_b(batch):
    tile = min(DEFAULT_TILE_B, _round_up(batch, 8))
    # Prefer >= 2 grid steps (v7x megacore) when the batch allows it.
    if pl.cdiv(batch, tile) < 2 and batch > 8:
        tile = max(8, _round_up(pl.cdiv(batch, 2), 8))
    return tile


def simplenn_forward(x, w1, b1, w2, b2, *, tile_b=None):
    """x: [B, 1, 28, 28] or [B, 784] float32. Returns log-probs [B, 10] float32.

    Weights follow [in_features, out_features] layout (transpose of PyTorch's
    nn.Linear.weight), so the kernel computes y = x @ W + b.
    """
    x = x.reshape(-1, IN_FEATURES)          # == x.view(-1, 28*28)
    B = x.shape[0]
    if tile_b is None:
        tile_b = _pick_tile_b(B)
    B_pad = _round_up(B, tile_b)

    # Pad + cast streamed operands to bf16; biases stay f32.
    x_p = jnp.zeros((B_pad, IN_PAD), jnp.bfloat16)
    x_p = x_p.at[:B, :IN_FEATURES].set(x.astype(jnp.bfloat16))
    w1_p = jnp.zeros((IN_PAD, HIDDEN), jnp.bfloat16)
    w1_p = w1_p.at[:IN_FEATURES, :].set(w1.astype(jnp.bfloat16))
    b1_2d = b1.reshape(1, HIDDEN).astype(jnp.float32)
    w2_p = jnp.zeros((HIDDEN, CLASS_PAD), jnp.bfloat16)
    w2_p = w2_p.at[:, :NUM_CLASSES].set(w2.astype(jnp.bfloat16))
    b2_p = jnp.full((1, CLASS_PAD), NEG_BIG, jnp.float32)
    b2_p = b2_p.at[0, :NUM_CLASSES].set(b2.astype(jnp.float32))

    grid = (B_pad // tile_b,)
    out = pl.pallas_call(
        simplenn_kernel,
        out_shape=jax.ShapeDtypeStruct((B_pad, CLASS_PAD), jnp.float32),
        grid_spec=pltpu.PrefetchScalarGridSpec(
            num_scalar_prefetch=0,
            grid=grid,
            in_specs=[
                pl.BlockSpec((tile_b, IN_PAD), lambda i: (i, 0)),       # x (streamed)
                pl.BlockSpec((IN_PAD, HIDDEN), lambda i: (0, 0)),       # W1 (resident)
                pl.BlockSpec((1, HIDDEN), lambda i: (0, 0)),            # b1
                pl.BlockSpec((HIDDEN, CLASS_PAD), lambda i: (0, 0)),    # W2 (resident)
                pl.BlockSpec((1, CLASS_PAD), lambda i: (0, 0)),         # b2
            ],
            out_specs=pl.BlockSpec((tile_b, CLASS_PAD), lambda i: (i, 0)),
        ),
        compiler_params=pltpu.CompilerParams(
            dimension_semantics=("parallel",),
        ),
    )(x_p, w1_p, b1_2d, w2_p, b2_p)

    return out[:B, :NUM_CLASSES]


def init_params(key):
    """Deterministic init mimicking PyTorch nn.Linear default (U(-1/sqrt(fan_in), +))."""
    k1, k2, k3, k4 = jax.random.split(key, 4)
    lim1 = 1.0 / jnp.sqrt(jnp.float32(IN_FEATURES))
    lim2 = 1.0 / jnp.sqrt(jnp.float32(HIDDEN))
    w1 = jax.random.uniform(k1, (IN_FEATURES, HIDDEN), jnp.float32, -lim1, lim1)
    b1 = jax.random.uniform(k2, (HIDDEN,), jnp.float32, -lim1, lim1)
    w2 = jax.random.uniform(k3, (HIDDEN, NUM_CLASSES), jnp.float32, -lim2, lim2)
    b2 = jax.random.uniform(k4, (NUM_CLASSES,), jnp.float32, -lim2, lim2)
    return w1, b1, w2, b2


if __name__ == "__main__":
    key = jax.random.PRNGKey(0)
    kx, kp = jax.random.split(key)

    # Small MNIST-like batch: [B, 1, 28, 28]
    B = 16
    x = jax.random.normal(kx, (B, 1, 28, 28), jnp.float32)
    w1, b1, w2, b2 = init_params(kp)

    out = simplenn_forward(x, w1, b1, w2, b2)
    out = jax.block_until_ready(out)
    assert out.shape == (B, NUM_CLASSES)

    # Reference with the same bf16-input / f32-accumulate recipe (tight check).
    xf = x.reshape(-1, IN_FEATURES).astype(jnp.bfloat16)
    h_ref = jnp.maximum(
        jnp.dot(xf, w1.astype(jnp.bfloat16), preferred_element_type=jnp.float32) + b1, 0.0)
    z_ref = jnp.dot(h_ref.astype(jnp.bfloat16), w2.astype(jnp.bfloat16),
                    preferred_element_type=jnp.float32) + b2
    ref = jax.nn.log_softmax(z_ref, axis=1)
    assert jnp.allclose(out, ref, atol=1e-3, rtol=1e-3)

    # Loose sanity vs the pure-f32 forward (bounds bf16 quantization error).
    h32 = jnp.maximum(x.reshape(-1, IN_FEATURES) @ w1 + b1, 0.0)
    ref32 = jax.nn.log_softmax(h32 @ w2 + b2, axis=1)
    assert jnp.allclose(out, ref32, atol=1e-1, rtol=1e-1)

    print("KERNEL_OK")
</pallas_src>

<mosaic_0001>
module attributes {stable_mosaic.version = 11 : i64} {
  func.func @simplenn_kernel(%arg0: i32, %arg1: memref<8x896xbf16, #tpu.memory_space<vmem>>, %arg2: memref<896x128xbf16, #tpu.memory_space<vmem>>, %arg3: memref<1x128xf32, #tpu.memory_space<vmem>>, %arg4: memref<128x128xbf16, #tpu.memory_space<vmem>>, %arg5: memref<1x128xf32, #tpu.memory_space<vmem>>, %arg6: memref<8x128xf32, #tpu.memory_space<vmem>>) attributes {dimension_semantics = [#tpu.dimension_semantics<parallel>], iteration_bounds = array<i64: 2>, scalar_prefetch = 0 : i64, scratch_operands = 0 : i64, tpu.core_type = #tpu.core_type<tc>, window_params = [{transform_indices = @transform_0, window_bounds = array<i64: 8, 896>}, {pipeline_mode = #tpu.pipeline_mode<synchronous>, transform_indices = @transform_1, window_bounds = array<i64: 896, 128>}, {pipeline_mode = #tpu.pipeline_mode<synchronous>, transform_indices = @transform_2, window_bounds = array<i64: 1, 128>}, {pipeline_mode = #tpu.pipeline_mode<synchronous>, transform_indices = @transform_3, window_bounds = array<i64: 128, 128>}, {pipeline_mode = #tpu.pipeline_mode<synchronous>, transform_indices = @transform_4, window_bounds = array<i64: 1, 128>}, {transform_indices = @transform_5, window_bounds = array<i64: 8, 128>}]} {
    %c0 = arith.constant 0 : index
    %c0_0 = arith.constant 0 : index
    %0 = vector.load %arg1[%c0, %c0_0] : memref<8x896xbf16, #tpu.memory_space<vmem>>, vector<8x896xbf16>
    %c0_1 = arith.constant 0 : index
    %c0_2 = arith.constant 0 : index
    %1 = vector.load %arg2[%c0_1, %c0_2] : memref<896x128xbf16, #tpu.memory_space<vmem>>, vector<896x128xbf16>
    %cst = arith.constant dense<0.000000e+00> : vector<8x128xf32>
    %2 = tpu.matmul %0, %1, %cst {dimension_numbers = #tpu.dot_dimension_numbers<[1], [0], [0], [1], [0, 0, 1, 1], [], []>} : vector<8x896xbf16>, vector<896x128xbf16>, vector<8x128xf32> -> vector<8x128xf32>
    %c0_3 = arith.constant 0 : index
    %c0_4 = arith.constant 0 : index
    %3 = vector.load %arg3[%c0_3, %c0_4] : memref<1x128xf32, #tpu.memory_space<vmem>>, vector<1x128xf32>
    %4 = vector.broadcast %3 : vector<1x128xf32> to vector<8x128xf32>
    %5 = arith.addf %2, %4 : vector<8x128xf32>
    %cst_5 = arith.constant 0.000000e+00 : f32
    %6 = vector.broadcast %cst_5 : f32 to vector<8x128xf32>
    %7 = arith.maximumf %5, %6 : vector<8x128xf32>
    %8 = arith.truncf %7 : vector<8x128xf32> to vector<8x128xbf16>
    %c0_6 = arith.constant 0 : index
    %c0_7 = arith.constant 0 : index
    %9 = vector.load %arg4[%c0_6, %c0_7] : memref<128x128xbf16, #tpu.memory_space<vmem>>, vector<128x128xbf16>
    %cst_8 = arith.constant dense<0.000000e+00> : vector<8x128xf32>
    %10 = tpu.matmul %8, %9, %cst_8 {dimension_numbers = #tpu.dot_dimension_numbers<[1], [0], [0], [1], [0, 0, 1, 1], [], []>} : vector<8x128xbf16>, vector<128x128xbf16>, vector<8x128xf32> -> vector<8x128xf32>
    %c0_9 = arith.constant 0 : index
    %c0_10 = arith.constant 0 : index
    %11 = vector.load %arg5[%c0_9, %c0_10] : memref<1x128xf32, #tpu.memory_space<vmem>>, vector<1x128xf32>
    %12 = vector.broadcast %11 : vector<1x128xf32> to vector<8x128xf32>
    %13 = arith.addf %10, %12 : vector<8x128xf32>
    %cst_11 = arith.constant dense<0xFF800000> : vector<8xf32>
    %14 = vector.multi_reduction <maximumf>, %13, %cst_11 [1] : vector<8x128xf32> to vector<8xf32>
    %15 = vector.shape_cast %14 : vector<8xf32> to vector<8x1xf32>
    %16 = vector.broadcast %15 : vector<8x1xf32> to vector<8x128xf32>
    %17 = arith.subf %13, %16 : vector<8x128xf32>
    %18 = math.exp %17 : vector<8x128xf32>
    %cst_12 = arith.constant dense<0.000000e+00> : vector<8xf32>
    %19 = vector.multi_reduction <add>, %18, %cst_12 [1] : vector<8x128xf32> to vector<8xf32>
    %20 = vector.shape_cast %19 : vector<8xf32> to vector<8x1xf32>
    %21 = math.log %20 : vector<8x1xf32>
    %22 = vector.broadcast %21 : vector<8x1xf32> to vector<8x128xf32>
    %23 = arith.subf %17, %22 : vector<8x128xf32>
    %c0_13 = arith.constant 0 : index
    %c0_14 = arith.constant 0 : index
    %24 = vector.load %arg6[%c0_13, %c0_14] : memref<8x128xf32, #tpu.memory_space<vmem>>, vector<8x128xf32>
    tpu.vector_store %arg6[%c0_13, %c0_14], %23 {strides = array<i32>} : memref<8x128xf32, #tpu.memory_space<vmem>>, vector<8x128xf32>,
    return
  }
  func.func @transform_0(%arg0: i32) -> (i32, i32) {
    %c0_i32 = arith.constant 0 : i32
    %c0_i32_0 = arith.constant 0 : i32
    return %arg0, %c0_i32 : i32, i32
  }
  func.func @transform_1(%arg0: i32) -> (i32, i32) {
    %c0_i32 = arith.constant 0 : i32
    %c0_i32_0 = arith.constant 0 : i32
    %c0_i32_1 = arith.constant 0 : i32
    return %c0_i32, %c0_i32_0 : i32, i32
  }
  func.func @transform_2(%arg0: i32) -> (i32, i32) {
    %c0_i32 = arith.constant 0 : i32
    %c0_i32_0 = arith.constant 0 : i32
    %c0_i32_1 = arith.constant 0 : i32
    return %c0_i32, %c0_i32_0 : i32, i32
  }
  func.func @transform_3(%arg0: i32) -> (i32, i32) {
    %c0_i32 = arith.constant 0 : i32
    %c0_i32_0 = arith.constant 0 : i32
    %c0_i32_1 = arith.constant 0 : i32
    return %c0_i32, %c0_i32_0 : i32, i32
  }
  func.func @transform_4(%arg0: i32) -> (i32, i32) {
    %c0_i32 = arith.constant 0 : i32
    %c0_i32_0 = arith.constant 0 : i32
    %c0_i32_1 = arith.constant 0 : i32
    return %c0_i32, %c0_i32_0 : i32, i32
  }
  func.func @transform_5(%arg0: i32) -> (i32, i32) {
    %c0_i32 = arith.constant 0 : i32
    %c0_i32_0 = arith.constant 0 : i32
    return %arg0, %c0_i32 : i32, i32
  }
}

</mosaic_0001>

<llo_original>
// kernel: tpu_custom_call.1
$region0: #{tpu_custom_call.1}
  #allocation0 [shape = 'u32[]', space=smem, size = 0x4, offset = 0x4, fixed_abs, tag = 'smem constant byte address 0x4 - core index']
  #allocation1 [shape = 'u32[144,128]{1,0:T(1,128)}', space=vmem, size = 0x12000, scoped, tag = 'internal scratch']
  %s0 = inlined_call_operand.hbm [shape: bf16[16,896], index: 0, kind: input, shape index: {}]
  %s1 = inlined_call_operand.hbm [shape: bf16[896,128], index: 1, kind: input, shape index: {}]
  %s2 = inlined_call_operand.vmem [shape: f32[1,128], index: 2, kind: input, shape index: {}]
  %s3 = inlined_call_operand.hbm [shape: bf16[128,128], index: 3, kind: input, shape index: {}]
  %s4 = inlined_call_operand.vmem [shape: f32[1,128], index: 4, kind: input, shape index: {}]
  %s5 = inlined_call_operand.hbm [shape: f32[16,128], index: 5, kind: output, shape index: {}]
  %s6 = sld [smem:[#allocation0]]
  $region65: #{tpu_custom_call.1} parent=0
    _
  %s8 = ssub.s32 1, %s6
  %s9 = scalar_select 0, %s8, %s6
  $region1: #{tpu_custom_call.1} parent=0
    #allocation2 [shape = 'u8[28672]{0}', space=vmem, size = 0x7000, scoped, tag = 'input window, operand 0']
    #allocation3 [shape = 's32[2]{0}', space=sflag, size = 0x8, scoped, tag = 'scoped memory for tpu_custom_call.1']
    #allocation4 [shape = 's32[2]{0}', space=sflag, size = 0x8, scoped, tag = 'scoped memory for tpu_custom_call.1']
    #allocation5 [shape = 'u8[229376]{0}', space=vmem, size = 0x38000, scoped, tag = 'input window, operand 1, single buffered']
    #allocation6 [shape = 's32[1]{0}', space=sflag, size = 0x4, scoped, tag = 'scoped memory for tpu_custom_call.1']
    #allocation7 [shape = 'u8[32768]{0}', space=vmem, size = 0x8000, scoped, tag = 'input window, operand 3, single buffered']
    #allocation8 [shape = 'u8[8192]{0}', space=vmem, size = 0x2000, scoped, tag = 'output window, operand 0']
    %10 = vsyncpa [#allocation3], 0
    %s11 = scalar_lea.sflag [#allocation3], 1
    %12 = vsyncpa %s11, 0
    %13 = vsyncpa [#allocation6], 0
    %14 = vsyncpa [#allocation4], 0
    %s15 = scalar_lea.sflag [#allocation4], 1
    %16 = vsyncpa %s15, 0
    loop: start=0, step=1, limit=4
    $region2: #{tpu_custom_call.1} parent=1 // loop_pre_header
      _
    $region3: #{tpu_custom_call.1} parent=1 // loop_header
      %s18 = sphi 0, %s22
      %p19 = scmp.ge.s32.totalorder %s18, 4
      %s28 = sphi 0, %s30
      %s31 = sphi 0, %s28
      %s32 = sphi 0, %s31
      %s48 = sphi 0, %s32
      %s52 = sphi 0, %s52
      %s54 = sphi 0, %s52
      %s55 = sphi 0, %s54
      %s69 = sphi 0, %s55
      %s73 = sphi 0, %s73
      %s75 = sphi 0, %s73
      %s76 = sphi 0, %s75
      %s90 = sphi 0, %s76
      %s94 = sphi 0, %s94
      %s96 = sphi 0, %s94
      %s97 = sphi 0, %s96
      %s111 = sphi 0, %s97
      %s115 = sphi 0, %s115
      %s117 = sphi 0, %s115
      %s118 = sphi 0, %s117
      %s132 = sphi 0, %s118
      %s138 = sphi 0, %s140
      %s141 = sphi 0, %s138
      %s142 = sphi 0, %s141
      %s158 = sphi 0, %s142
    $region4: #{tpu_custom_call.1} parent=1 // loop_header_branch
      %21 = sbr.rel (%p19) target = $region8
    $region5: #{tpu_custom_call.1} parent=1 // loop_body
      %s23 = ssub.s32 %s18, 1
      %s24 = ssub.s32 %s18, 2
      %s25 = sadd.s32 %s18, 1
      %s26 = ssub.s32 %s18, %s25
      %p27 = scmp.eq.s32.totalorder %s26, 0
      %s29 = sadd.s32 %s28, 1
      %s30 = scalar_select %p27, %s28, %s29
      %p33 = pneg %p27
      %p34 = scmp.eq.s32.totalorder %s18, 1
      %p35 = por %p33, %p34
      %p36 = scmp.ne.s32.totalorder %s28, %s31
      %p37 = scmp.eq.s32.totalorder %s18, 0
      %p38 = por %p36, %p37
      %p39 = scmp.ne.s32.totalorder %s28, %s31
      %p40 = scmp.eq.s32.totalorder %s23, 1
      %p41 = por %p39, %p40
      %p42 = scmp.ne.s32.totalorder %s31, %s32
      %p43 = scmp.eq.s32.totalorder %s23, 0
      %p44 = por %p42, %p43
      %p45 = scmp.ne.s32.totalorder %s31, %s32
      %p46 = scmp.eq.s32.totalorder %s24, 1
      %p47 = por %p45, %p46
      %p49 = scmp.ne.s32.totalorder %s32, %s48
      %p50 = scmp.eq.s32.totalorder %s24, 0
      %p51 = por %p49, %p50
      %s53 = sadd.s32 %s52, 1
      %p56 = scmp.eq.s32.totalorder %s18, 1
      %p57 = scmp.ne.s32.totalorder %s52, %s54
      %p58 = scmp.eq.s32.totalorder %s18, 0
      %p59 = por %p57, %p58
      %p60 = scmp.ne.s32.totalorder %s52, %s54
      %p61 = scmp.eq.s32.totalorder %s23, 1
      %p62 = por %p60, %p61
      %p63 = scmp.ne.s32.totalorder %s54, %s55
      %p64 = scmp.eq.s32.totalorder %s23, 0
      %p65 = por %p63, %p64
      %p66 = scmp.ne.s32.totalorder %s54, %s55
      %p67 = scmp.eq.s32.totalorder %s24, 1
      %p68 = por %p66, %p67
      %p70 = scmp.ne.s32.totalorder %s55, %s69
      %p71 = scmp.eq.s32.totalorder %s24, 0
      %p72 = por %p70, %p71
      %s74 = sadd.s32 %s73, 1
      %p77 = scmp.eq.s32.totalorder %s18, 1
      %p78 = scmp.ne.s32.totalorder %s73, %s75
      %p79 = scmp.eq.s32.totalorder %s18, 0
      %p80 = por %p78, %p79
      %p81 = scmp.ne.s32.totalorder %s73, %s75
      %p82 = scmp.eq.s32.totalorder %s23, 1
      %p83 = por %p81, %p82
      %p84 = scmp.ne.s32.totalorder %s75, %s76
      %p85 = scmp.eq.s32.totalorder %s23, 0
      %p86 = por %p84, %p85
      %p87 = scmp.ne.s32.totalorder %s75, %s76
      %p88 = scmp.eq.s32.totalorder %s24, 1
      %p89 = por %p87, %p88
      %p91 = scmp.ne.s32.totalorder %s76, %s90
      %p92 = scmp.eq.s32.totalorder %s24, 0
      %p93 = por %p91, %p92
      %s95 = sadd.s32 %s94, 1
      %p98 = scmp.eq.s32.totalorder %s18, 1
      %p99 = scmp.ne.s32.totalorder %s94, %s96
      %p100 = scmp.eq.s32.totalorder %s18, 0
      %p101 = por %p99, %p100
      %p102 = scmp.ne.s32.totalorder %s94, %s96
      %p103 = scmp.eq.s32.totalorder %s23, 1
      %p104 = por %p102, %p103
      %p105 = scmp.ne.s32.totalorder %s96, %s97
      %p106 = scmp.eq.s32.totalorder %s23, 0
      %p107 = por %p105, %p106
      %p108 = scmp.ne.s32.totalorder %s96, %s97
      %p109 = scmp.eq.s32.totalorder %s24, 1
      %p110 = por %p108, %p109
      %p112 = scmp.ne.s32.totalorder %s97, %s111
      %p113 = scmp.eq.s32.totalorder %s24, 0
      %p114 = por %p112, %p113
      %s116 = sadd.s32 %s115, 1
      %p119 = scmp.eq.s32.totalorder %s18, 1
      %p120 = scmp.ne.s32.totalorder %s115, %s117
      %p121 = scmp.eq.s32.totalorder %s18, 0
      %p122 = por %p120, %p121
      %p123 = scmp.ne.s32.totalorder %s115, %s117
      %p124 = scmp.eq.s32.totalorder %s23, 1
      %p125 = por %p123, %p124
      %p126 = scmp.ne.s32.totalorder %s117, %s118
      %p127 = scmp.eq.s32.totalorder %s23, 0
      %p128 = por %p126, %p127
      %p129 = scmp.ne.s32.totalorder %s117, %s118
      %p130 = scmp.eq.s32.totalorder %s24, 1
      %p131 = por %p129, %p130
      %p133 = scmp.ne.s32.totalorder %s118, %s132
      %p134 = scmp.eq.s32.totalorder %s24, 0
      %p135 = por %p133, %p134
      %s136 = ssub.s32 %s18, %s25
      %p137 = scmp.eq.s32.totalorder %s136, 0
      %s139 = sadd.s32 %s138, 1
      %s140 = scalar_select %p137, %s138, %s139
      %p143 = pneg %p137
      %p144 = scmp.eq.s32.totalorder %s18, 1
      %p145 = por %p143, %p144
      %p146 = scmp.ne.s32.totalorder %s138, %s141
      %p147 = scmp.eq.s32.totalorder %s18, 0
      %p148 = por %p146, %p147
      %p149 = scmp.ne.s32.totalorder %s138, %s141
      %p150 = scmp.eq.s32.totalorder %s23, 1
      %p151 = por %p149, %p150
      %p152 = scmp.ne.s32.totalorder %s141, %s142
      %p153 = scmp.eq.s32.totalorder %s23, 0
      %p154 = por %p152, %p153
      %p155 = scmp.ne.s32.totalorder %s141, %s142
      %p156 = scmp.eq.s32.totalorder %s24, 1
      %p157 = por %p155, %p156
      %p159 = scmp.ne.s32.totalorder %s142, %s158
      %p160 = scmp.eq.s32.totalorder %s24, 0
      %p161 = por %p159, %p160
      %p162 = scmp.le.s32.totalorder 1, %s18
      %p163 = scmp.lt.s32.totalorder %s18, 3
      %p164 = pnand %p162, %p163
      %p165 = pneg %p164
      // Predicated region
      $region9: #{tpu_custom_call.1} parent=5 // pred_check
        _
      $region10: #{tpu_custom_call.1} parent=5 // pred_check_branch
        %167 = sbr.rel (%p164) target = $region12
      $region11: #{tpu_custom_call.1} parent=5 // pred_region
        %s168 = ssub.s32 %s18, 1
        // Predicated region
        $region13: #{tpu_custom_call.1} parent=11 // pred_check
          %p169 = pneg %p65
        $region14: #{tpu_custom_call.1} parent=11 // pred_check_branch
          %171 = sbr.rel (%p169) target = $region16
        $region15: #{tpu_custom_call.1} parent=11 // pred_region
          %s173 = ssub.s32 7168, 7168
          %174 = vsyncadd [#allocation6], %s173
          %s175 = sshll.u32 [#allocation5], 4
          %s176 = int_to_ptr.vmem [resolvable:$true] %s175
          %181 = dma.hbm_to_vmem [thread:$0]  %s1, 7168, %s176, [#allocation6], 64, 64, 4
        $region16: #{tpu_custom_call.1} parent=11 // pred_fallthru
          _
        // Predicated region
        $region17: #{tpu_custom_call.1} parent=11 // pred_check
          %p182 = pneg %p86
        $region18: #{tpu_custom_call.1} parent=11 // pred_check_branch
          %184 = sbr.rel (%p182) target = $region20
        $region19: #{tpu_custom_call.1} parent=11 // pred_region
          _
        $region20: #{tpu_custom_call.1} parent=11 // pred_fallthru
          _
        // Predicated region
        $region21: #{tpu_custom_call.1} parent=11 // pred_check
          %p185 = pneg %p107
        $region22: #{tpu_custom_call.1} parent=11 // pred_check_branch
          %187 = sbr.rel (%p185) target = $region24
        $region23: #{tpu_custom_call.1} parent=11 // pred_region
          %s189 = ssub.s32 1024, 1024
          %190 = vsyncadd [#allocation6], %s189
          %s191 = sshll.u32 [#allocation7], 4
          %s192 = int_to_ptr.vmem [resolvable:$true] %s191
          %197 = dma.hbm_to_vmem [thread:$0]  %s3, 1024, %s192, [#allocation6], 64, 64, 4
        $region24: #{tpu_custom_call.1} parent=11 // pred_fallthru
          _
        // Predicated region
        $region25: #{tpu_custom_call.1} parent=11 // pred_check
          %p198 = pneg %p128
        $region26: #{tpu_custom_call.1} parent=11 // pred_check_branch
          %200 = sbr.rel (%p198) target = $region28
        $region27: #{tpu_custom_call.1} parent=11 // pred_region
          _
        $region28: #{tpu_custom_call.1} parent=11 // pred_fallthru
          _
      $region12: #{tpu_custom_call.1} parent=5 // pred_fallthru
        _
      %p201 = scmp.lt.s32.totalorder %s18, 2
      // Predicated region
      $region29: #{tpu_custom_call.1} parent=5 // pred_check
        %p202 = pneg %p201
      $region30: #{tpu_custom_call.1} parent=5 // pred_check_branch
        %204 = sbr.rel (%p202) target = $region32
      $region31: #{tpu_custom_call.1} parent=5 // pred_region
        // Predicated region
        $region33: #{tpu_custom_call.1} parent=31 // pred_check
          %p205 = pneg %p38
        $region34: #{tpu_custom_call.1} parent=31 // pred_check_branch
          %207 = sbr.rel (%p205) target = $region36
        $region35: #{tpu_custom_call.1} parent=31 // pred_region
          %s208 = sand.u32 %s28, 1
          %s209 = scalar_lea.sflag [#allocation3], %s208
          %s210 = sand.u32 %s28, 1
          %s211 = smul.addr %s210, 28
          %s212 = scalar_lea.vmem [#allocation2], %s211
          %s214 = ssub.s32 448, 448
          %215 = vsyncadd %s209, %s214
          %s216 = smul.addr %s18, 7
          %s217 = smul.addr %s216, 64
          %s218 = scalar_lea.hbm %s0, %s217
          %s220 = sshll.u32 %s212, 4
          %s221 = int_to_ptr.vmem [resolvable:$true] %s220
          %223 = dma.hbm_to_vmem [thread:$0]  %s218, 448, %s221, %s209
        $region36: #{tpu_custom_call.1} parent=31 // pred_fallthru
          _
      $region32: #{tpu_custom_call.1} parent=5 // pred_fallthru
        _
      %p224 = scmp.le.s32.totalorder 1, %s18
      %p225 = scmp.lt.s32.totalorder %s18, 3
      %p226 = pnand %p224, %p225
      %p227 = pneg %p226
      // Predicated region
      $region37: #{tpu_custom_call.1} parent=5 // pred_check
        _
      $region38: #{tpu_custom_call.1} parent=5 // pred_check_branch
        %229 = sbr.rel (%p226) target = $region40
      $region39: #{tpu_custom_call.1} parent=5 // pred_region
        %s230 = ssub.s32 %s18, 1
        %s231 = sand.u32 %s31, 1
        %s232 = scalar_lea.sflag [#allocation3], %s231
        %s233 = sand.u32 %s31, 1
        %s234 = smul.addr %s233, 28
        %s235 = scalar_lea.vmem [#allocation2], %s234
        // Predicated region
        $region41: #{tpu_custom_call.1} parent=39 // pred_check
          %p236 = pneg %p44
        $region42: #{tpu_custom_call.1} parent=39 // pred_check_branch
          %238 = sbr.rel (%p236) target = $region44
        $region43: #{tpu_custom_call.1} parent=39 // pred_region
          %239 = dma.done %s232, 448
        $region44: #{tpu_custom_call.1} parent=39 // pred_fallthru
          _
        // Predicated region
        $region45: #{tpu_custom_call.1} parent=39 // pred_check
          %p240 = pneg %p65
        $region46: #{tpu_custom_call.1} parent=39 // pred_check_branch
          %242 = sbr.rel (%p240) target = $region48
        $region47: #{tpu_custom_call.1} parent=39 // pred_region
          %243 = dma.done [#allocation6], 7168
        $region48: #{tpu_custom_call.1} parent=39 // pred_fallthru
          _
        // Predicated region
        $region49: #{tpu_custom_call.1} parent=39 // pred_check
          %p244 = pneg %p107
        $region50: #{tpu_custom_call.1} parent=39 // pred_check_branch
          %246 = sbr.rel (%p244) target = $region52
        $region51: #{tpu_custom_call.1} parent=39 // pred_region
          %247 = dma.done [#allocation6], 1024
        $region52: #{tpu_custom_call.1} parent=39 // pred_fallthru
          _
        %s248 = sand.u32 %s31, 1
        %s249 = scalar_lea.sflag [#allocation3], %s248
        %s250 = sand.u32 %s31, 1
        %s251 = smul.addr %s250, 28
        %s252 = scalar_lea.vmem [#allocation2], %s251
        %p253 = pneg %p44
        %p254 = pneg %p41
        %p255 = pneg %p65
        %p256 = pneg %p62
        %p257 = pneg %p86
        %p258 = pneg %p83
        %p259 = pneg %p107
        %p260 = pneg %p104
        %p261 = pneg %p128
        %p262 = pneg %p125
        %p263 = pneg %p154
        %p264 = pneg %p151
        %s265 = sand.u32 %s141, 1
        %s266 = scalar_lea.sflag [#allocation4], %s265
        %s267 = sand.u32 %s141, 1
        %s268 = smul.addr %s267, 8
        %s269 = scalar_lea.vmem [#allocation8], %s268
        %v271 = vld [vmem:[%s235] sm:$0xff]
        %v272 = vld [vmem:[%s235 + $0x8] sm:$0xff]
        %v273 = vld [vmem:[%s235 + $0x10] sm:$0xff]
        %v274 = vld [vmem:[%s235 + $0x18] sm:$0xf]
        %v275 = vld [vmem:[#allocation5] sm:$0xf]
        %v276 = vld [vmem:[#allocation5 + $0x4] sm:$0xf]
        %v277 = vld [vmem:[#allocation5 + $0x8] sm:$0xf]
        %v278 = vld [vmem:[#allocation5 + $0xc] sm:$0xf]
        %v279 = vld [vmem:[#allocation5 + $0x10] sm:$0xf]
        %v280 = vld [vmem:[#allocation5 + $0x14] sm:$0xf]
        %v281 = vld [vmem:[#allocation5 + $0x18] sm:$0xf]
        %v282 = vld [vmem:[#allocation5 + $0x1c] sm:$0xf]
        %v283 = vld [vmem:[#allocation5 + $0x20] sm:$0xf]
        %v284 = vld [vmem:[#allocation5 + $0x24] sm:$0xf]
        %v285 = vld [vmem:[#allocation5 + $0x28] sm:$0xf]
        %v286 = vld [vmem:[#allocation5 + $0x2c] sm:$0xf]
        %v287 = vld [vmem:[#allocation5 + $0x30] sm:$0xf]
        %v288 = vld [vmem:[#allocation5 + $0x34] sm:$0xf]
        %v289 = vld [vmem:[#allocation5 + $0x38] sm:$0xf]
        %v290 = vld [vmem:[#allocation5 + $0x3c] sm:$0xf]
        %v291 = vld [vmem:[#allocation5 + $0x40] sm:$0xf]
        %v292 = vld [vmem:[#allocation5 + $0x44] sm:$0xf]
        %v293 = vld [vmem:[#allocation5 + $0x48] sm:$0xf]
        %v294 = vld [vmem:[#allocation5 + $0x4c] sm:$0xf]
        %v295 = vld [vmem:[#allocation5 + $0x50] sm:$0xf]
        %v296 = vld [vmem:[#allocation5 + $0x54] sm:$0xf]
        %v297 = vld [vmem:[#allocation5 + $0x58] sm:$0xf]
        %v298 = vld [vmem:[#allocation5 + $0x5c] sm:$0xf]
        %v299 = vld [vmem:[#allocation5 + $0x60] sm:$0xf]
        %v300 = vld [vmem:[#allocation5 + $0x64] sm:$0xf]
        %v301 = vld [vmem:[#allocation5 + $0x68] sm:$0xf]
        %v302 = vld [vmem:[#allocation5 + $0x6c] sm:$0xf]
        %v303 = vld [vmem:[#allocation5 + $0x70] sm:$0xf]
        %v304 = vld [vmem:[#allocation5 + $0x74] sm:$0xf]
        %v305 = vld [vmem:[#allocation5 + $0x78] sm:$0xf]
        %v306 = vld [vmem:[#allocation5 + $0x7c] sm:$0xf]
        %v307 = vld [vmem:[#allocation5 + $0x80] sm:$0xf]
        %v308 = vld [vmem:[#allocation5 + $0x84] sm:$0xf]
        %v309 = vld [vmem:[#allocation5 + $0x88] sm:$0xf]
        %v310 = vld [vmem:[#allocation5 + $0x8c] sm:$0xf]
        %v311 = vld [vmem:[#allocation5 + $0x90] sm:$0xf]
        %v312 = vld [vmem:[#allocation5 + $0x94] sm:$0xf]
        %v313 = vld [vmem:[#allocation5 + $0x98] sm:$0xf]
        %v314 = vld [vmem:[#allocation5 + $0x9c] sm:$0xf]
        %v315 = vld [vmem:[#allocation5 + $0xa0] sm:$0xf]
        %v316 = vld [vmem:[#allocation5 + $0xa4] sm:$0xf]
        %v317 = vld [vmem:[#allocation5 + $0xa8] sm:$0xf]
        %v318 = vld [vmem:[#allocation5 + $0xac] sm:$0xf]
        %v319 = vld [vmem:[#allocation5 + $0xb0] sm:$0xf]
        %v320 = vld [vmem:[#allocation5 + $0xb4] sm:$0xf]
        %v321 = vld [vmem:[#allocation5 + $0xb8] sm:$0xf]
        %v322 = vld [vmem:[#allocation5 + $0xbc] sm:$0xf]
        %v323 = vld [vmem:[#allocation5 + $0xc0] sm:$0xf]
        %v324 = vld [vmem:[#allocation5 + $0xc4] sm:$0xf]
        %v325 = vld [vmem:[#allocation5 + $0xc8] sm:$0xf]
        %v326 = vld [vmem:[#allocation5 + $0xcc] sm:$0xf]
        %v327 = vld [vmem:[#allocation5 + $0xd0] sm:$0xf]
        %v328 = vld [vmem:[#allocation5 + $0xd4] sm:$0xf]
        %v329 = vld [vmem:[#allocation5 + $0xd8] sm:$0xf]
        %v330 = vld [vmem:[#allocation5 + $0xdc] sm:$0xf]
        %v331 = vld [vmem:[#allocation5 + $0xe0] sm:$0xf]
        %v332 = vld [vmem:[#allocation5 + $0xe4] sm:$0xf]
        %v333 = vld [vmem:[#allocation5 + $0xe8] sm:$0xf]
        %v334 = vld [vmem:[#allocation5 + $0xec] sm:$0xf]
        %v335 = vld [vmem:[#allocation5 + $0xf0] sm:$0xf]
        %v336 = vld [vmem:[#allocation5 + $0xf4] sm:$0xf]
        %v337 = vld [vmem:[#allocation5 + $0xf8] sm:$0xf]
        %v338 = vld [vmem:[#allocation5 + $0xfc] sm:$0xf]
        %v339 = vld [vmem:[#allocation5 + $0x100] sm:$0xf]
        %v340 = vld [vmem:[#allocation5 + $0x104] sm:$0xf]
        %v341 = vld [vmem:[#allocation5 + $0x108] sm:$0xf]
        %v342 = vld [vmem:[#allocation5 + $0x10c] sm:$0xf]
        %v343 = vld [vmem:[#allocation5 + $0x110] sm:$0xf]
        %v344 = vld [vmem:[#allocation5 + $0x114] sm:$0xf]
        %v345 = vld [vmem:[#allocation5 + $0x118] sm:$0xf]
        %v346 = vld [vmem:[#allocation5 + $0x11c] sm:$0xf]
        %v347 = vld [vmem:[#allocation5 + $0x120] sm:$0xf]
        %v348 = vld [vmem:[#allocation5 + $0x124] sm:$0xf]
        %v349 = vld [vmem:[#allocation5 + $0x128] sm:$0xf]
        %v350 = vld [vmem:[#allocation5 + $0x12c] sm:$0xf]
        %v351 = vld [vmem:[#allocation5 + $0x130] sm:$0xf]
        %v352 = vld [vmem:[#allocation5 + $0x134] sm:$0xf]
        %v353 = vld [vmem:[#allocation5 + $0x138] sm:$0xf]
        %v354 = vld [vmem:[#allocation5 + $0x13c] sm:$0xf]
        %v355 = vld [vmem:[#allocation5 + $0x140] sm:$0xf]
        %v356 = vld [vmem:[#allocation5 + $0x144] sm:$0xf]
        %v357 = vld [vmem:[#allocation5 + $0x148] sm:$0xf]
        %v358 = vld [vmem:[#allocation5 + $0x14c] sm:$0xf]
        %v359 = vld [vmem:[#allocation5 + $0x150] sm:$0xf]
        %v360 = vld [vmem:[#allocation5 + $0x154] sm:$0xf]
        %v361 = vld [vmem:[#allocation5 + $0x158] sm:$0xf]
        %v362 = vld [vmem:[#allocation5 + $0x15c] sm:$0xf]
        %v363 = vld [vmem:[#allocation5 + $0x160] sm:$0xf]
        %v364 = vld [vmem:[#allocation5 + $0x164] sm:$0xf]
        %v365 = vld [vmem:[#allocation5 + $0x168] sm:$0xf]
        %v366 = vld [vmem:[#allocation5 + $0x16c] sm:$0xf]
        %v367 = vld [vmem:[#allocation5 + $0x170] sm:$0xf]
        %v368 = vld [vmem:[#allocation5 + $0x174] sm:$0xf]
        %v369 = vld [vmem:[#allocation5 + $0x178] sm:$0xf]
        %v370 = vld [vmem:[#allocation5 + $0x17c] sm:$0xf]
        %v371 = vld [vmem:[#allocation5 + $0x180] sm:$0xf]
        %v372 = vld [vmem:[#allocation5 + $0x184] sm:$0xf]
        %v373 = vld [vmem:[#allocation5 + $0x188] sm:$0xf]
        %v374 = vld [vmem:[#allocation5 + $0x18c] sm:$0xf]
        %v375 = vld [vmem:[#allocation5 + $0x190] sm:$0xf]
        %v376 = vld [vmem:[#allocation5 + $0x194] sm:$0xf]
        %v377 = vld [vmem:[#allocation5 + $0x198] sm:$0xf]
        %v378 = vld [vmem:[#allocation5 + $0x19c] sm:$0xf]
        %v379 = vld [vmem:[#allocation5 + $0x1a0] sm:$0xf]
        %v380 = vld [vmem:[#allocation5 + $0x1a4] sm:$0xf]
        %v381 = vld [vmem:[#allocation5 + $0x1a8] sm:$0xf]
        %v382 = vld [vmem:[#allocation5 + $0x1ac] sm:$0xf]
        %v383 = vld [vmem:[#allocation5 + $0x1b0] sm:$0xf]
        %v384 = vld [vmem:[#allocation5 + $0x1b4] sm:$0xf]
        %v385 = vld [vmem:[#allocation5 + $0x1b8] sm:$0xf]
        %v386 = vld [vmem:[#allocation5 + $0x1bc] sm:$0xf]
        %v387 = vld [vmem:[%s2] sm:$0x1]
        %v389 = vlaneseq
        %v390 = vshrl.u32 %v389, 7
        %v391 = vsub.s32 0, %v390
        %v392 = vrot.slane %v387, %v391
        %v398 = vunpack.c.l.b16 %v271
        %v399 = vunpack.c.h.b16 %v271
        %v400 = vunpack.c.l.b16 %v272
        %v401 = vunpack.c.h.b16 %v272
        %v402 = vunpack.c.l.b16 %v273
        %v403 = vunpack.c.h.b16 %v273
        %v404 = vunpack.c.l.b16 %v274
        %v405 = vpack.c.b16 %v398, %v398
        %v406 = vpack.c.b16 %v399, %v399
        %v407 = vpack.c.b16 %v400, %v400
        %v408 = vpack.c.b16 %v401, %v401
        %v409 = vpack.c.b16 %v402, %v402
        %v410 = vpack.c.b16 %v403, %v403
        %v411 = vpack.c.b16 %v404, %v404
        %v531 = vunpack.c.l.b16 %v275
        %v532 = vunpack.c.l.b16 %v276
        %v533 = vunpack.c.l.b16 %v277
        %v534 = vunpack.c.l.b16 %v278
        %v535 = vunpack.c.l.b16 %v279
        %v536 = vunpack.c.l.b16 %v280
        %v537 = vunpack.c.l.b16 %v281
        %v538 = vunpack.c.l.b16 %v282
        %v539 = vunpack.c.l.b16 %v283
        %v540 = vunpack.c.l.b16 %v284
        %v541 = vunpack.c.l.b16 %v285
        %v542 = vunpack.c.l.b16 %v286
        %v543 = vunpack.c.l.b16 %v287
        %v544 = vunpack.c.l.b16 %v288
        %v545 = vunpack.c.l.b16 %v289
        %v546 = vunpack.c.l.b16 %v290
        %v547 = vunpack.c.l.b16 %v291
        %v548 = vunpack.c.l.b16 %v292
        %v549 = vunpack.c.l.b16 %v293
        %v550 = vunpack.c.l.b16 %v294
        %v551 = vunpack.c.l.b16 %v295
        %v552 = vunpack.c.l.b16 %v296
        %v553 = vunpack.c.l.b16 %v297
        %v554 = vunpack.c.l.b16 %v298
        %v555 = vunpack.c.l.b16 %v299
        %v556 = vunpack.c.l.b16 %v300
        %v557 = vunpack.c.l.b16 %v301
        %v558 = vunpack.c.l.b16 %v302
        %v559 = vunpack.c.l.b16 %v303
        %v560 = vunpack.c.l.b16 %v304
        %v561 = vunpack.c.l.b16 %v305
        %v562 = vunpack.c.l.b16 %v306
        %v563 = vunpack.c.l.b16 %v307
        %v564 = vunpack.c.l.b16 %v308
        %v565 = vunpack.c.l.b16 %v309
        %v566 = vunpack.c.l.b16 %v310
        %v567 = vunpack.c.l.b16 %v311
        %v568 = vunpack.c.l.b16 %v312
        %v569 = vunpack.c.l.b16 %v313
        %v570 = vunpack.c.l.b16 %v314
        %v571 = vunpack.c.l.b16 %v315
        %v572 = vunpack.c.l.b16 %v316
        %v573 = vunpack.c.l.b16 %v317
        %v574 = vunpack.c.l.b16 %v318
        %v575 = vunpack.c.l.b16 %v319
        %v576 = vunpack.c.l.b16 %v320
        %v577 = vunpack.c.l.b16 %v321
        %v578 = vunpack.c.l.b16 %v322
        %v579 = vunpack.c.l.b16 %v323
        %v580 = vunpack.c.l.b16 %v324
        %v581 = vunpack.c.l.b16 %v325
        %v582 = vunpack.c.l.b16 %v326
        %v583 = vunpack.c.l.b16 %v327
        %v584 = vunpack.c.l.b16 %v328
        %v585 = vunpack.c.l.b16 %v329
        %v586 = vunpack.c.l.b16 %v330
        %v587 = vunpack.c.l.b16 %v331
        %v588 = vunpack.c.l.b16 %v332
        %v589 = vunpack.c.l.b16 %v333
        %v590 = vunpack.c.l.b16 %v334
        %v591 = vunpack.c.l.b16 %v335
        %v592 = vunpack.c.l.b16 %v336
        %v593 = vunpack.c.l.b16 %v337
        %v594 = vunpack.c.l.b16 %v338
        %v595 = vunpack.c.l.b16 %v339
        %v596 = vunpack.c.l.b16 %v340
        %v597 = vunpack.c.l.b16 %v341
        %v598 = vunpack.c.l.b16 %v342
        %v599 = vunpack.c.l.b16 %v343
        %v600 = vunpack.c.l.b16 %v344
        %v601 = vunpack.c.l.b16 %v345
        %v602 = vunpack.c.l.b16 %v346
        %v603 = vunpack.c.l.b16 %v347
        %v604 = vunpack.c.l.b16 %v348
        %v605 = vunpack.c.l.b16 %v349
        %v606 = vunpack.c.l.b16 %v350
        %v607 = vunpack.c.l.b16 %v351
        %v608 = vunpack.c.l.b16 %v352
        %v609 = vunpack.c.l.b16 %v353
        %v610 = vunpack.c.l.b16 %v354
        %v611 = vunpack.c.l.b16 %v355
        %v612 = vunpack.c.l.b16 %v356
        %v613 = vunpack.c.l.b16 %v357
        %v614 = vunpack.c.l.b16 %v358
        %v615 = vunpack.c.l.b16 %v359
        %v616 = vunpack.c.l.b16 %v360
        %v617 = vunpack.c.l.b16 %v361
        %v618 = vunpack.c.l.b16 %v362
        %v619 = vunpack.c.l.b16 %v363
        %v620 = vunpack.c.l.b16 %v364
        %v621 = vunpack.c.l.b16 %v365
        %v622 = vunpack.c.l.b16 %v366
        %v623 = vunpack.c.l.b16 %v367
        %v624 = vunpack.c.l.b16 %v368
        %v625 = vunpack.c.l.b16 %v369
        %v626 = vunpack.c.l.b16 %v370
        %v627 = vunpack.c.l.b16 %v371
        %v628 = vunpack.c.l.b16 %v372
        %v629 = vunpack.c.l.b16 %v373
        %v630 = vunpack.c.l.b16 %v374
        %v631 = vunpack.c.l.b16 %v375
        %v632 = vunpack.c.l.b16 %v376
        %v633 = vunpack.c.l.b16 %v377
        %v634 = vunpack.c.l.b16 %v378
        %v635 = vunpack.c.l.b16 %v379
        %v636 = vunpack.c.l.b16 %v380
        %v637 = vunpack.c.l.b16 %v381
        %v638 = vunpack.c.l.b16 %v382
        %v639 = vunpack.c.l.b16 %v383
        %v640 = vunpack.c.l.b16 %v384
        %v641 = vunpack.c.l.b16 %v385
        %v642 = vunpack.c.l.b16 %v386
        %v643 = vpack.c.b16 %v532, %v531
        %v644 = vpack.c.b16 %v534, %v533
        %v645 = vpack.c.b16 %v536, %v535
        %v646 = vpack.c.b16 %v538, %v537
        %v647 = vpack.c.b16 %v540, %v539
        %v648 = vpack.c.b16 %v542, %v541
        %v649 = vpack.c.b16 %v544, %v543
        %v650 = vpack.c.b16 %v546, %v545
        %v651 = vpack.c.b16 %v548, %v547
        %v652 = vpack.c.b16 %v550, %v549
        %v653 = vpack.c.b16 %v552, %v551
        %v654 = vpack.c.b16 %v554, %v553
        %v655 = vpack.c.b16 %v556, %v555
        %v656 = vpack.c.b16 %v558, %v557
        %v657 = vpack.c.b16 %v560, %v559
        %v658 = vpack.c.b16 %v562, %v561
        %v659 = vpack.c.b16 %v564, %v563
        %v660 = vpack.c.b16 %v566, %v565
        %v661 = vpack.c.b16 %v568, %v567
        %v662 = vpack.c.b16 %v570, %v569
        %v663 = vpack.c.b16 %v572, %v571
        %v664 = vpack.c.b16 %v574, %v573
        %v665 = vpack.c.b16 %v576, %v575
        %v666 = vpack.c.b16 %v578, %v577
        %v667 = vpack.c.b16 %v580, %v579
        %v668 = vpack.c.b16 %v582, %v581
        %v669 = vpack.c.b16 %v584, %v583
        %v670 = vpack.c.b16 %v586, %v585
        %v671 = vpack.c.b16 %v588, %v587
        %v672 = vpack.c.b16 %v590, %v589
        %v673 = vpack.c.b16 %v592, %v591
        %v674 = vpack.c.b16 %v594, %v593
        %v675 = vpack.c.b16 %v596, %v595
        %v676 = vpack.c.b16 %v598, %v597
        %v677 = vpack.c.b16 %v600, %v599
        %v678 = vpack.c.b16 %v602, %v601
        %v679 = vpack.c.b16 %v604, %v603
        %v680 = vpack.c.b16 %v606, %v605
        %v681 = vpack.c.b16 %v608, %v607
        %v682 = vpack.c.b16 %v610, %v609
        %v683 = vpack.c.b16 %v612, %v611
        %v684 = vpack.c.b16 %v614, %v613
        %v685 = vpack.c.b16 %v616, %v615
        %v686 = vpack.c.b16 %v618, %v617
        %v687 = vpack.c.b16 %v620, %v619
        %v688 = vpack.c.b16 %v622, %v621
        %v689 = vpack.c.b16 %v624, %v623
        %v690 = vpack.c.b16 %v626, %v625
        %v691 = vpack.c.b16 %v628, %v627
        %v692 = vpack.c.b16 %v630, %v629
        %v693 = vpack.c.b16 %v632, %v631
        %v694 = vpack.c.b16 %v634, %v633
        %v695 = vpack.c.b16 %v636, %v635
        %v696 = vpack.c.b16 %v638, %v637
        %v697 = vpack.c.b16 %v640, %v639
        %v698 = vpack.c.b16 %v642, %v641
        %755 = vmatprep.subr.bf16.mxu0 0
        %756 = vmatpush1.bf16.msra.mxu0 %v643
        %757 = vmatprep.subr.bf16.mxu0 0
        %758 = vmatpush1.bf16.msra.mxu0 %v644
        %759 = vmatprep.subr.bf16.mxu0 0
        %760 = vmatpush1.bf16.msra.mxu0 %v645
        %761 = vmatprep.subr.bf16.mxu0 0
        %762 = vmatpush1.bf16.msra.mxu0 %v646
        %763 = vmatprep.subr.bf16.mxu0 0
        %764 = vmatpush1.bf16.msra.mxu0 %v647
        %765 = vmatprep.subr.bf16.mxu0 0
        %766 = vmatpush1.bf16.msra.mxu0 %v648
        %767 = vmatprep.subr.bf16.mxu0 0
        %768 = vmatpush1.bf16.msra.mxu0 %v649
        %769 = vmatprep.subr.bf16.mxu0 0
        %770 = vmatpush1.bf16.msra.mxu0 %v650
        %771 = vmatprep.subr.bf16.mxu0 0
        %772 = vmatpush1.bf16.msra.mxu0 %v651
        %773 = vmatprep.subr.bf16.mxu0 0
        %774 = vmatpush1.bf16.msra.mxu0 %v652
        %775 = vmatprep.subr.bf16.mxu0 0
        %776 = vmatpush1.bf16.msra.mxu0 %v653
        %777 = vmatprep.subr.bf16.mxu0 0
        %778 = vmatpush1.bf16.msra.mxu0 %v654
        %779 = vmatprep.subr.bf16.mxu0 0
        %780 = vmatpush1.bf16.msra.mxu0 %v655
        %781 = vmatprep.subr.bf16.mxu0 0
        %782 = vmatpush1.bf16.msra.mxu0 %v656
        %783 = vmatprep.subr.bf16.mxu0 0
        %784 = vmatpush1.bf16.msra.mxu0 %v657
        %785 = vmatprep.subr.bf16.mxu0 0
        %786 = vmatpush1.bf16.msra.mxu0 %v658
        %787 = vmatprep.mubr.bf16.mxu0 %v406
        %788 = vmatmul.mubr.bf16.gmra.mrb[0].mxu0 %v405
        %v789 = vpop.f32.mrb[0].mxu0
        %v790 = vadd.f32 %v392, %v789
        %v791 = vpop.f32.mrb[0].mxu0
        %v792 = vpop.f32.mrb[0].mxu0
        %v793 = vpop.f32.mrb[0].mxu0
        %794 = vdwg.mxu0
        %795 = vmatprep.subr.bf16.mxu0 0
        %796 = vmatpush1.bf16.msra.mxu0 %v659
        %797 = vmatprep.subr.bf16.mxu0 0
        %798 = vmatpush1.bf16.msra.mxu0 %v660
        %799 = vmatprep.subr.bf16.mxu0 0
        %800 = vmatpush1.bf16.msra.mxu0 %v661
        %801 = vmatprep.subr.bf16.mxu0 0
        %802 = vmatpush1.bf16.msra.mxu0 %v662
        %803 = vmatprep.subr.bf16.mxu0 0
        %804 = vmatpush1.bf16.msra.mxu0 %v663
        %805 = vmatprep.subr.bf16.mxu0 0
        %806 = vmatpush1.bf16.msra.mxu0 %v664
        %807 = vmatprep.subr.bf16.mxu0 0
        %808 = vmatpush1.bf16.msra.mxu0 %v665
        %809 = vmatprep.subr.bf16.mxu0 0
        %810 = vmatpush1.bf16.msra.mxu0 %v666
        %811 = vmatprep.subr.bf16.mxu0 0
        %812 = vmatpush1.bf16.msra.mxu0 %v667
        %813 = vmatprep.subr.bf16.mxu0 0
        %814 = vmatpush1.bf16.msra.mxu0 %v668
        %815 = vmatprep.subr.bf16.mxu0 0
        %816 = vmatpush1.bf16.msra.mxu0 %v669
        %817 = vmatprep.subr.bf16.mxu0 0
        %818 = vmatpush1.bf16.msra.mxu0 %v670
        %819 = vmatprep.subr.bf16.mxu0 0
        %820 = vmatpush1.bf16.msra.mxu0 %v671
        %821 = vmatprep.subr.bf16.mxu0 0
        %822 = vmatpush1.bf16.msra.mxu0 %v672
        %823 = vmatprep.subr.bf16.mxu0 0
        %824 = vmatpush1.bf16.msra.mxu0 %v673
        %825 = vmatprep.subr.bf16.mxu0 0
        %826 = vmatpush1.bf16.msra.mxu0 %v674
        %827 = vmatprep.mubr.bf16.mxu0 %v408
        %828 = vmatmul.mubr.bf16.gmra.mrb[0].mxu0 %v407
        %v829 = vpop.f32.mrb[0].mxu0
        %v830 = vadd.f32 %v790, %v829
        %v831 = vpop.f32.mrb[0].mxu0
        %v832 = vpop.f32.mrb[0].mxu0
        %v833 = vpop.f32.mrb[0].mxu0
        %834 = vdwg.mxu0
        %835 = vmatprep.subr.bf16.mxu0 0
        %836 = vmatpush1.bf16.msra.mxu0 %v675
        %837 = vmatprep.subr.bf16.mxu0 0
        %838 = vmatpush1.bf16.msra.mxu0 %v676
        %839 = vmatprep.subr.bf16.mxu0 0
        %840 = vmatpush1.bf16.msra.mxu0 %v677
        %841 = vmatprep.subr.bf16.mxu0 0
        %842 = vmatpush1.bf16.msra.mxu0 %v678
        %843 = vmatprep.subr.bf16.mxu0 0
        %844 = vmatpush1.bf16.msra.mxu0 %v679
        %845 = vmatprep.subr.bf16.mxu0 0
        %846 = vmatpush1.bf16.msra.mxu0 %v680
        %847 = vmatprep.subr.bf16.mxu0 0
        %848 = vmatpush1.bf16.msra.mxu0 %v681
        %849 = vmatprep.subr.bf16.mxu0 0
        %850 = vmatpush1.bf16.msra.mxu0 %v682
        %851 = vmatprep.subr.bf16.mxu0 0
        %852 = vmatpush1.bf16.msra.mxu0 %v683
        %853 = vmatprep.subr.bf16.mxu0 0
        %854 = vmatpush1.bf16.msra.mxu0 %v684
        %855 = vmatprep.subr.bf16.mxu0 0
        %856 = vmatpush1.bf16.msra.mxu0 %v685
        %857 = vmatprep.subr.bf16.mxu0 0
        %858 = vmatpush1.bf16.msra.mxu0 %v686
        %859 = vmatprep.subr.bf16.mxu0 0
        %860 = vmatpush1.bf16.msra.mxu0 %v687
        %861 = vmatprep.subr.bf16.mxu0 0
        %862 = vmatpush1.bf16.msra.mxu0 %v688
        %863 = vmatprep.subr.bf16.mxu0 0
        %864 = vmatpush1.bf16.msra.mxu0 %v689
        %865 = vmatprep.subr.bf16.mxu0 0
        %866 = vmatpush1.bf16.msra.mxu0 %v690
        %867 = vmatprep.mubr.bf16.mxu0 %v410
        %868 = vmatmul.mubr.bf16.gmra.mrb[0].mxu0 %v409
        %v869 = vpop.f32.mrb[0].mxu0
        %v870 = vadd.f32 %v830, %v869
        %v871 = vpop.f32.mrb[0].mxu0
        %v872 = vpop.f32.mrb[0].mxu0
        %v873 = vpop.f32.mrb[0].mxu0
        %874 = vdwg.mxu0
        %875 = vmatprep.subr.bf16.mxu0 0
        %876 = vmatpush1.bf16.msra.mxu0 %v691
        %877 = vmatprep.subr.bf16.mxu0 0
        %878 = vmatpush1.bf16.msra.mxu0 %v692
        %879 = vmatprep.subr.bf16.mxu0 0
        %880 = vmatpush1.bf16.msra.mxu0 %v693
        %881 = vmatprep.subr.bf16.mxu0 0
        %882 = vmatpush1.bf16.msra.mxu0 %v694
        %883 = vmatprep.subr.bf16.mxu0 0
        %884 = vmatpush1.bf16.msra.mxu0 %v695
        %885 = vmatprep.subr.bf16.mxu0 0
        %886 = vmatpush1.bf16.msra.mxu0 %v696
        %887 = vmatprep.subr.bf16.mxu0 0
        %888 = vmatpush1.bf16.msra.mxu0 %v697
        %889 = vmatprep.subr.bf16.mxu0 0
        %890 = vmatpush1.bf16.msra.mxu0 %v698
        %891 = vmatprep.subr.bf16.mxu0 0
        %892 = vmatpush1.bf16.msra.mxu0 0
        %893 = vmatprep.subr.bf16.mxu0 0
        %894 = vmatpush1.bf16.msra.mxu0 0
        %895 = vmatprep.subr.bf16.mxu0 0
        %896 = vmatpush1.bf16.msra.mxu0 0
        %897 = vmatprep.subr.bf16.mxu0 0
        %898 = vmatpush1.bf16.msra.mxu0 0
        %899 = vmatprep.subr.bf16.mxu0 0
        %900 = vmatpush1.bf16.msra.mxu0 0
        %901 = vmatprep.subr.bf16.mxu0 0
        %902 = vmatpush1.bf16.msra.mxu0 0
        %903 = vmatprep.subr.bf16.mxu0 0
        %904 = vmatpush1.bf16.msra.mxu0 0
        %905 = vmatprep.subr.bf16.mxu0 0
        %906 = vmatpush1.bf16.msra.mxu0 0
        %907 = vmatprep.mubr.bf16.mxu0 0
        %908 = vmatmul.mubr.bf16.gmra.mrb[0].mxu0 %v411
        %v909 = vpop.f32.mrb[0].mxu0
        %v910 = vadd.f32 %v870, %v909
        %v911 = vpop.f32.mrb[0].mxu0
        %v912 = vpop.f32.mrb[0].mxu0
        %v913 = vpop.f32.mrb[0].mxu0
        %914 = vdwg.mxu0
        %v915 = vmax.f32 %v910, 0.0
        %v916 = vpack.c.bf16 %v915, %v915
        %v917 = vld [vmem:[#allocation7] sm:$0xf]
        %v918 = vld [vmem:[#allocation7 + $0x4] sm:$0xf]
        %v919 = vld [vmem:[#allocation7 + $0x8] sm:$0xf]
        %v920 = vld [vmem:[#allocation7 + $0xc] sm:$0xf]
        %v921 = vld [vmem:[#allocation7 + $0x10] sm:$0xf]
        %v922 = vld [vmem:[#allocation7 + $0x14] sm:$0xf]
        %v923 = vld [vmem:[#allocation7 + $0x18] sm:$0xf]
        %v924 = vld [vmem:[#allocation7 + $0x1c] sm:$0xf]
        %v925 = vld [vmem:[#allocation7 + $0x20] sm:$0xf]
        %v926 = vld [vmem:[#allocation7 + $0x24] sm:$0xf]
        %v927 = vld [vmem:[#allocation7 + $0x28] sm:$0xf]
        %v928 = vld [vmem:[#allocation7 + $0x2c] sm:$0xf]
        %v929 = vld [vmem:[#allocation7 + $0x30] sm:$0xf]
        %v930 = vld [vmem:[#allocation7 + $0x34] sm:$0xf]
        %v931 = vld [vmem:[#allocation7 + $0x38] sm:$0xf]
        %v932 = vld [vmem:[#allocation7 + $0x3c] sm:$0xf]
        %v933 = vld [vmem:[%s4] sm:$0x1]
        %v935 = vlaneseq
        %v936 = vshrl.u32 %v935, 7
        %v937 = vsub.s32 0, %v936
        %v938 = vrot.slane %v933, %v937
        %v956 = vunpack.c.l.b16 %v917
        %v957 = vunpack.c.l.b16 %v918
        %v958 = vunpack.c.l.b16 %v919
        %v959 = vunpack.c.l.b16 %v920
        %v960 = vunpack.c.l.b16 %v921
        %v961 = vunpack.c.l.b16 %v922
        %v962 = vunpack.c.l.b16 %v923
        %v963 = vunpack.c.l.b16 %v924
        %v964 = vunpack.c.l.b16 %v925
        %v965 = vunpack.c.l.b16 %v926
        %v966 = vunpack.c.l.b16 %v927
        %v967 = vunpack.c.l.b16 %v928
        %v968 = vunpack.c.l.b16 %v929
        %v969 = vunpack.c.l.b16 %v930
        %v970 = vunpack.c.l.b16 %v931
        %v971 = vunpack.c.l.b16 %v932
        %v972 = vpack.c.b16 %v957, %v956
        %v973 = vpack.c.b16 %v959, %v958
        %v974 = vpack.c.b16 %v961, %v960
        %v975 = vpack.c.b16 %v963, %v962
        %v976 = vpack.c.b16 %v965, %v964
        %v977 = vpack.c.b16 %v967, %v966
        %v978 = vpack.c.b16 %v969, %v968
        %v979 = vpack.c.b16 %v971, %v970
        %988 = vmatprep.subr.bf16.mxu0 0
        %989 = vmatpush1.bf16.msra.mxu0 %v972
        %990 = vmatprep.subr.bf16.mxu0 0
        %991 = vmatpush1.bf16.msra.mxu0 %v973
        %992 = vmatprep.subr.bf16.mxu0 0
        %993 = vmatpush1.bf16.msra.mxu0 %v974
        %994 = vmatprep.subr.bf16.mxu0 0
        %995 = vmatpush1.bf16.msra.mxu0 %v975
        %996 = vmatprep.subr.bf16.mxu0 0
        %997 = vmatpush1.bf16.msra.mxu0 %v976
        %998 = vmatprep.subr.bf16.mxu0 0
        %999 = vmatpush1.bf16.msra.mxu0 %v977
        %1000 = vmatprep.subr.bf16.mxu0 0
        %1001 = vmatpush1.bf16.msra.mxu0 %v978
        %1002 = vmatprep.subr.bf16.mxu0 0
        %1003 = vmatpush1.bf16.msra.mxu0 %v979
        %1004 = vmatprep.subr.bf16.mxu0 0
        %1005 = vmatpush1.bf16.msra.mxu0 0
        %1006 = vmatprep.subr.bf16.mxu0 0
        %1007 = vmatpush1.bf16.msra.mxu0 0
        %1008 = vmatprep.subr.bf16.mxu0 0
        %1009 = vmatpush1.bf16.msra.mxu0 0
        %1010 = vmatprep.subr.bf16.mxu0 0
        %1011 = vmatpush1.bf16.msra.mxu0 0
        %1012 = vmatprep.subr.bf16.mxu0 0
        %1013 = vmatpush1.bf16.msra.mxu0 0
        %1014 = vmatprep.subr.bf16.mxu0 0
        %1015 = vmatpush1.bf16.msra.mxu0 0
        %1016 = vmatprep.subr.bf16.mxu0 0
        %1017 = vmatpush1.bf16.msra.mxu0 0
        %1018 = vmatprep.subr.bf16.mxu0 0
        %1019 = vmatpush1.bf16.msra.mxu0 0
        %1020 = vmatprep.mubr.bf16.mxu0 0
        %1021 = vmatmul.mubr.bf16.gmra.mrb[0].mxu0 %v916
        %v1022 = vpop.f32.mrb[0].mxu0
        %v1023 = vadd.f32 %v938, %v1022
        %v1024 = vpop.f32.mrb[0].mxu0
        %v1025 = vpop.f32.mrb[0].mxu0
        %v1026 = vpop.f32.mrb[0].mxu0
        %1027 = vdwg.mxu0
        %1028 = vmax.xlane.f32.xlu0 %v1023
        %v1029 = vpop.xlane.xlu0 %1028
        %v1030 = vsub.f32 %v1023, %v1029
        %v1031 = vmul.f32 %v1030, 1.442695
        %v1032 = vpow.pop %v1031
        %1033 = vadd.xlane.f32.xlu0 %v1032
        %v1034 = vpop.xlane.xlu0 %1033
        %v1035 = vlog2.pop %v1034
        %v1036 = vmul.f32 %v1035, 0.6931472
        %v1037 = vsub.f32 %v1030, %v1036
        %1038 = vst [vmem:[%s269] sm:$0xff] %v1037
        %s1039 = sand.u32 %s141, 1
        %s1040 = scalar_lea.sflag [#allocation4], %s1039
        %s1041 = sand.u32 %s141, 1
        %s1042 = smul.addr %s1041, 8
        %s1043 = scalar_lea.vmem [#allocation8], %s1042
        // Predicated region
        $region53: #{tpu_custom_call.1} parent=39 // pred_check
          %p1044 = pneg %p151
        $region54: #{tpu_custom_call.1} parent=39 // pred_check_branch
          %1046 = sbr.rel (%p1044) target = $region56
        $region55: #{tpu_custom_call.1} parent=39 // pred_region
          %s1048 = ssub.s32 128, 128
          %1049 = vsyncadd %s1040, %s1048
          %s1050 = smul.addr %s23, 128
          %s1051 = scalar_lea.hbm %s5, %s1050
          %s1053 = sshll.u32 %s1043, 4
          %s1054 = int_to_ptr.vmem [resolvable:$true] %s1053
          %1056 = dma.vmem_to_hbm [thread:$0]  %s1054, 128, %s1051, %s1040
        $region56: #{tpu_custom_call.1} parent=39 // pred_fallthru
          _
      $region40: #{tpu_custom_call.1} parent=5 // pred_fallthru
        _
      %p1057 = scmp.le.s32.totalorder 2, %s18
      // Predicated region
      $region57: #{tpu_custom_call.1} parent=5 // pred_check
        %p1058 = pneg %p1057
      $region58: #{tpu_custom_call.1} parent=5 // pred_check_branch
        %1060 = sbr.rel (%p1058) target = $region60
      $region59: #{tpu_custom_call.1} parent=5 // pred_region
        %s1061 = ssub.s32 %s18, 2
        // Predicated region
        $region61: #{tpu_custom_call.1} parent=59 // pred_check
          %p1062 = pneg %p157
        $region62: #{tpu_custom_call.1} parent=59 // pred_check_branch
          %1064 = sbr.rel (%p1062) target = $region64
        $region63: #{tpu_custom_call.1} parent=59 // pred_region
          %s1065 = sand.u32 %s142, 1
          %s1066 = scalar_lea.sflag [#allocation4], %s1065
          %s1067 = sand.u32 %s142, 1
          %s1068 = smul.addr %s1067, 8
          %s1069 = scalar_lea.vmem [#allocation8], %s1068
          %1070 = dma.done %s1066, 128
        $region64: #{tpu_custom_call.1} parent=59 // pred_fallthru
          _
      $region60: #{tpu_custom_call.1} parent=5 // pred_fallthru
        _
    $region6: #{tpu_custom_call.1} parent=1 // loop_footer
      %s22 = sadd.s32 1, %s18
    $region7: #{tpu_custom_call.1} parent=1 // loop_footer_branch
      %17 = sbr.rel target = $region3
    $region8: #{tpu_custom_call.1} parent=1 // loop_exit
      _
    %1071 = vsyncpa [#allocation3], 1
    %s1072 = scalar_lea.sflag [#allocation3], 1
    %1073 = vsyncpa %s1072, 1
    %1074 = vsyncpa [#allocation6], 1
    %1075 = vsyncpa [#allocation4], 1
    %s1076 = scalar_lea.sflag [#allocation4], 1
    %1077 = vsyncpa %s1076, 1

</llo_original>
